<compile_context>
chip_gen: v5e
topology: v5e:2x2
jax: 0.10.0
libtpu: 0.0.40
codegen_flags: <defaults>
</compile_context>

<pallas_src>
import numpy as np
import jax
import jax.numpy as jnp
from jax.experimental import pallas as pl
from jax.experimental.pallas import tpu as pltpu

NUM_HEADS = 8
_LANE = 128


def _round_up(x, m):
    return ((x + m - 1) // m) * m


def _pad2(x, rows, cols):
    r, c = x.shape
    return jnp.pad(x, ((0, rows - r), (0, cols - c)))


def _sublane(dt):
    # minimum second-minor tile: 8 for 4-byte, 16 for 2-byte, 32 for 1-byte.
    return max(8, 32 // jnp.dtype(dt).itemsize)


# ---------------------------------------------------------------------------
# Kernel:  hidden = relu(audio @ W_a' + meta @ W_m' + b')
#          out    = hidden @ wf2 + bf2
# ---------------------------------------------------------------------------
def _fusion_kernel(audio_ref, meta_ref, wa_ref, wm_ref, b1_ref,
                   wf2_ref, bf2_ref, out_ref):
    f32 = jnp.float32
    hidden = (jnp.dot(audio_ref[...], wa_ref[...], preferred_element_type=f32)
              + jnp.dot(meta_ref[...], wm_ref[...], preferred_element_type=f32)
              + b1_ref[...])
    hidden = jnp.maximum(hidden, 0.0).astype(wf2_ref.dtype)
    out_ref[...] = (jnp.dot(hidden, wf2_ref[...], preferred_element_type=f32)
                    + bf2_ref[...]).astype(out_ref.dtype)


# ---------------------------------------------------------------------------
# Parameter init (PyTorch-module-shaped) and one-time fold / pad / cast.
# ---------------------------------------------------------------------------
def init_params(key, audio_dim, metadata_dim, hidden_dim):
    assert hidden_dim % NUM_HEADS == 0
    ks = jax.random.split(key, 16)
    s = 0.05

    def w(k, shape):
        return s * jax.random.normal(k, shape, jnp.float32)

    return {
        "wa": w(ks[0], (audio_dim, hidden_dim)),    "ba": w(ks[1], (1, hidden_dim)),
        "wm": w(ks[2], (metadata_dim, hidden_dim)), "bm": w(ks[3], (1, hidden_dim)),
        # MultiheadAttention in_proj split into q/k/v + out_proj.  q/k are only
        # consumed by the pure-JAX reference (dead for seq_len == 1).
        "wq": w(ks[4], (hidden_dim, hidden_dim)),   "bq": w(ks[5], (1, hidden_dim)),
        "wk": w(ks[6], (hidden_dim, hidden_dim)),   "bk": w(ks[7], (1, hidden_dim)),
        "wv": w(ks[8], (hidden_dim, hidden_dim)),   "bv": w(ks[9], (1, hidden_dim)),
        "wo": w(ks[10], (hidden_dim, hidden_dim)),  "bo": w(ks[11], (1, hidden_dim)),
        "wf1": w(ks[12], (2 * hidden_dim, hidden_dim)), "bf1": w(ks[13], (1, hidden_dim)),
        "wf2": w(ks[14], (hidden_dim, hidden_dim)),     "bf2": w(ks[15], (1, hidden_dim)),
    }


def fold_and_pad_params(params, *, compute_dtype=jnp.float32):
    """Pre-compose the (softmax == 1) linear chain and pad to lane multiples.

    Call ONCE per model (hoisted out of the per-step path).  Folding runs in
    f32; folded matrices are then cast to `compute_dtype` and zero-padded so
    every contraction / lane axis is a multiple of 128 (exact results).
    """
    f32 = jnp.float32
    wa, ba = params["wa"].astype(f32), params["ba"].astype(f32)
    wm, bm = params["wm"].astype(f32), params["bm"].astype(f32)
    wv, bv = params["wv"].astype(f32), params["bv"].astype(f32)
    wo, bo = params["wo"].astype(f32), params["bo"].astype(f32)
    wf1, bf1 = params["wf1"].astype(f32), params["bf1"].astype(f32)
    wf2, bf2 = params["wf2"].astype(f32), params["bf2"].astype(f32)

    A, H = wa.shape
    M = wm.shape[0]
    wf1a, wf1m = wf1[:H], wf1[H:]   # rows hitting attended_audio / attended_metadata

    # attended_audio    = metadata_proj @ wvo + bvo   (query=audio,    kv=metadata)
    # attended_metadata = audio_proj    @ wvo + bvo   (query=metadata, kv=audio)
    wvo = wv @ wo
    bvo = bv @ wo + bo
    w_audio = wa @ (wvo @ wf1m)     # audio feeds attended_metadata -> wf1[H:]
    w_meta = wm @ (wvo @ wf1a)      # metadata feeds attended_audio -> wf1[:H]
    b_hidden = (ba @ wvo + bvo) @ wf1m + (bm @ wvo + bvo) @ wf1a + bf1

    cdt = compute_dtype
    A_p = _round_up(A, _LANE)
    M_p = _round_up(M, _LANE)
    H_p = _round_up(H, _LANE)

    return {
        "w_audio": _pad2(w_audio.astype(cdt), A_p, H_p),
        "w_meta": _pad2(w_meta.astype(cdt), M_p, H_p),
        "b_hidden": _pad2(b_hidden, 1, H_p),          # stays f32
        "wf2": _pad2(wf2.astype(cdt), H_p, H_p),
        "bf2": _pad2(bf2, 1, H_p),                    # stays f32
        "dims": (A, M, H, A_p, M_p, H_p),
        "compute_dtype": cdt,
    }


def _vmem_limit_bytes():
    try:
        cap = int(pltpu.get_tpu_info().vmem_capacity_bytes)
    except Exception:
        cap = 64 * 1024 * 1024        # conservative (v7x-sized) fallback
    # ~85% of physical, capped: ~54 MiB on v7x, ~108 MiB on v5e/v6e.
    return min(int(cap * 0.85), 112 * 1024 * 1024)


def cross_modal_fusion(audio, metadata, folded, *, block_b=512,
                       out_dtype=jnp.float32):
    """Fused CrossModalFusion forward (eval mode) on pre-folded params."""
    A, M, H, A_p, M_p, H_p = folded["dims"]
    cdt = folded["compute_dtype"]
    B = audio.shape[0]
    assert audio.shape == (B, A) and metadata.shape == (B, M)

    # Dtype-aware batch tile (sublane multiple: 8 f32, 16 bf16).
    sub = max(_sublane(cdt), _sublane(out_dtype))
    TB = _round_up(min(block_b, max(B, 1)), sub)
    B_p = _round_up(B, TB)
    # Prefer >= 2 batch tiles so the "parallel" axis shards across both v7x
    # TensorCores (no-op for tiny B).
    if B_p // TB == 1 and TB >= 2 * sub:
        TB = _round_up(-(-B // 2), sub)
        B_p = _round_up(B, TB)
    grid = (B_p // TB,)

    # Per-call work: pad/cast the activations only (weights already prepared).
    audio_p = _pad2(audio.astype(cdt), B_p, A_p)
    meta_p = _pad2(metadata.astype(cdt), B_p, M_p)

    w_audio, w_meta = folded["w_audio"], folded["w_meta"]
    b_hidden, wf2, bf2 = folded["b_hidden"], folded["wf2"], folded["bf2"]

    def act_spec(cols):
        return pl.BlockSpec((TB, cols), lambda i: (i, 0))

    def const_spec(arr):
        # Weights/biases revisit the same block every grid step -> one buffer.
        return pl.BlockSpec(arr.shape, lambda i: (0, 0),
                            pipeline_mode=pl.Buffered(buffer_count=1))

    in_specs = [act_spec(A_p), act_spec(M_p),
                const_spec(w_audio), const_spec(w_meta), const_spec(b_hidden),
                const_spec(wf2), const_spec(bf2)]
    out_spec = pl.BlockSpec((TB, H_p), lambda i: (i, 0))

    # VMEM budget check: constants single-buffered, activation/output tiles
    # double-buffered by the BlockSpec pipeline.
    w_item = jnp.dtype(cdt).itemsize
    out_item = jnp.dtype(out_dtype).itemsize
    const_bytes = (A_p + M_p + H_p) * H_p * w_item + 2 * H_p * 4
    stream_bytes = 2 * (TB * (A_p + M_p) * w_item + TB * H_p * out_item)
    vmem_limit = _vmem_limit_bytes()
    if const_bytes + stream_bytes + (2 << 20) > vmem_limit:
        # TODO(synk): fall back to an H-tiled grid with an accumulator instead
        # of erroring, if hidden_dim ever grows past the resident-weight budget.
        raise ValueError(
            f"CrossModalFusion resident set (~{(const_bytes + stream_bytes) >> 20} MiB) "
            f"exceeds the VMEM budget ({vmem_limit >> 20} MiB); use "
            "compute_dtype=jnp.bfloat16, a smaller block_b, or tile the hidden axis.")

    flops = 2 * B_p * (A_p + M_p + H_p) * H_p
    bytes_accessed = (const_bytes + B_p * (A_p + M_p) * w_item
                      + B_p * H_p * out_item)
    cost = pl.CostEstimate(flops=int(flops), transcendentals=0,
                           bytes_accessed=int(bytes_accessed))

    out = pl.pallas_call(
        _fusion_kernel,
        out_shape=jax.ShapeDtypeStruct((B_p, H_p), out_dtype),
        grid=grid,
        in_specs=in_specs,
        out_specs=out_spec,
        compiler_params=pltpu.CompilerParams(
            dimension_semantics=("parallel",),
            vmem_limit_bytes=vmem_limit,
        ),
        cost_estimate=cost,
    )(audio_p, meta_p, w_audio, w_meta, b_hidden, wf2, bf2)

    return out[:B, :H]


def cross_modal_fusion_ref(audio, metadata, p):
    """Pure-JAX reference of the PyTorch forward in eval mode, including the
    (mathematically identity) q/k/softmax path of nn.MultiheadAttention."""
    H = p["wa"].shape[1]
    dh = H // NUM_HEADS
    a_h = audio @ p["wa"] + p["ba"]
    m_h = metadata @ p["wm"] + p["bm"]

    def attn(q_in, kv_in):
        B = q_in.shape[0]
        q = (q_in @ p["wq"] + p["bq"]).reshape(B, NUM_HEADS, dh)
        k = (kv_in @ p["wk"] + p["bk"]).reshape(B, NUM_HEADS, dh)
        v = (kv_in @ p["wv"] + p["bv"]).reshape(B, NUM_HEADS, dh)
        scores = jnp.sum(q * k, axis=-1, keepdims=True) / jnp.sqrt(float(dh))
        w = jax.nn.softmax(scores, axis=-1)          # single key -> exactly 1
        attended = (w * v).reshape(B, H)
        return attended @ p["wo"] + p["bo"]

    att_a = attn(a_h, m_h)      # query=audio,    key/value=metadata
    att_m = attn(m_h, a_h)      # query=metadata, key/value=audio
    comb = jnp.concatenate([att_a, att_m], axis=1)
    h = jnp.maximum(comb @ p["wf1"] + p["bf1"], 0.0)
    return h @ p["wf2"] + p["bf2"]


if __name__ == "__main__":
    B, AUDIO_DIM, META_DIM, HIDDEN = 2, 16, 12, 32

    key = jax.random.PRNGKey(0)
    k_a, k_m, k_p = jax.random.split(key, 3)
    audio = jax.random.normal(k_a, (B, AUDIO_DIM), jnp.float32)
    metadata = jax.random.normal(k_m, (B, META_DIM), jnp.float32)
    params = init_params(k_p, AUDIO_DIM, META_DIM, HIDDEN)

    ref = cross_modal_fusion_ref(audio, metadata, params)

    # f32 compute: matches the full-attention reference up to re-association
    # from the offline weight fold.
    folded_f32 = fold_and_pad_params(params, compute_dtype=jnp.float32)
    out = jax.block_until_ready(cross_modal_fusion(audio, metadata, folded_f32))
    assert out.shape == (B, HIDDEN)
    np.testing.assert_allclose(np.asarray(out), np.asarray(ref),
                               rtol=1e-4, atol=1e-5)

    # bf16 compute (fast MXU path on every generation), f32 accumulation.
    folded_bf16 = fold_and_pad_params(params, compute_dtype=jnp.bfloat16)
    out_bf16 = jax.block_until_ready(
        cross_modal_fusion(audio, metadata, folded_bf16))
    np.testing.assert_allclose(np.asarray(out_bf16), np.asarray(ref),
                               rtol=5e-2, atol=5e-2)

    print("KERNEL_OK")
</pallas_src>

<mosaic_0001>
module attributes {stable_mosaic.version = 11 : i64} {
  func.func @_fusion_kernel(%arg0: i32, %arg1: memref<8x128xf32, #tpu.memory_space<vmem>>, %arg2: memref<8x128xf32, #tpu.memory_space<vmem>>, %arg3: memref<128x128xf32, #tpu.memory_space<vmem>>, %arg4: memref<128x128xf32, #tpu.memory_space<vmem>>, %arg5: memref<1x128xf32, #tpu.memory_space<vmem>>, %arg6: memref<128x128xf32, #tpu.memory_space<vmem>>, %arg7: memref<1x128xf32, #tpu.memory_space<vmem>>, %arg8: memref<8x128xf32, #tpu.memory_space<vmem>>) attributes {dimension_semantics = [#tpu.dimension_semantics<parallel>], iteration_bounds = array<i64: 1>, scalar_prefetch = 0 : i64, scratch_operands = 0 : i64, tpu.core_type = #tpu.core_type<tc>, window_params = [{transform_indices = @transform_0, window_bounds = array<i64: 8, 128>}, {transform_indices = @transform_1, window_bounds = array<i64: 8, 128>}, {pipeline_mode = #tpu.pipeline_mode<synchronous>, transform_indices = @transform_2, window_bounds = array<i64: 128, 128>}, {pipeline_mode = #tpu.pipeline_mode<synchronous>, transform_indices = @transform_3, window_bounds = array<i64: 128, 128>}, {pipeline_mode = #tpu.pipeline_mode<synchronous>, transform_indices = @transform_4, window_bounds = array<i64: 1, 128>}, {pipeline_mode = #tpu.pipeline_mode<synchronous>, transform_indices = @transform_5, window_bounds = array<i64: 128, 128>}, {pipeline_mode = #tpu.pipeline_mode<synchronous>, transform_indices = @transform_6, window_bounds = array<i64: 1, 128>}, {transform_indices = @transform_7, window_bounds = array<i64: 8, 128>}]} {
    %c0 = arith.constant 0 : index
    %c0_0 = arith.constant 0 : index
    %0 = vector.load %arg1[%c0, %c0_0] : memref<8x128xf32, #tpu.memory_space<vmem>>, vector<8x128xf32>
    %c0_1 = arith.constant 0 : index
    %c0_2 = arith.constant 0 : index
    %1 = vector.load %arg3[%c0_1, %c0_2] : memref<128x128xf32, #tpu.memory_space<vmem>>, vector<128x128xf32>
    %cst = arith.constant dense<0.000000e+00> : vector<8x128xf32>
    %2 = tpu.matmul %0, %1, %cst {dimension_numbers = #tpu.dot_dimension_numbers<[1], [0], [0], [1], [0, 0, 1, 1], [], []>} : vector<8x128xf32>, vector<128x128xf32>, vector<8x128xf32> -> vector<8x128xf32>
    %c0_3 = arith.constant 0 : index
    %c0_4 = arith.constant 0 : index
    %3 = vector.load %arg2[%c0_3, %c0_4] : memref<8x128xf32, #tpu.memory_space<vmem>>, vector<8x128xf32>
    %c0_5 = arith.constant 0 : index
    %c0_6 = arith.constant 0 : index
    %4 = vector.load %arg4[%c0_5, %c0_6] : memref<128x128xf32, #tpu.memory_space<vmem>>, vector<128x128xf32>
    %cst_7 = arith.constant dense<0.000000e+00> : vector<8x128xf32>
    %5 = tpu.matmul %3, %4, %cst_7 {dimension_numbers = #tpu.dot_dimension_numbers<[1], [0], [0], [1], [0, 0, 1, 1], [], []>} : vector<8x128xf32>, vector<128x128xf32>, vector<8x128xf32> -> vector<8x128xf32>
    %6 = arith.addf %2, %5 : vector<8x128xf32>
    %c0_8 = arith.constant 0 : index
    %c0_9 = arith.constant 0 : index
    %7 = vector.load %arg5[%c0_8, %c0_9] : memref<1x128xf32, #tpu.memory_space<vmem>>, vector<1x128xf32>
    %8 = vector.broadcast %7 : vector<1x128xf32> to vector<8x128xf32>
    %9 = arith.addf %6, %8 : vector<8x128xf32>
    %cst_10 = arith.constant 0.000000e+00 : f32
    %10 = vector.broadcast %cst_10 : f32 to vector<8x128xf32>
    %11 = arith.maximumf %9, %10 : vector<8x128xf32>
    %c0_11 = arith.constant 0 : index
    %c0_12 = arith.constant 0 : index
    %12 = vector.load %arg6[%c0_11, %c0_12] : memref<128x128xf32, #tpu.memory_space<vmem>>, vector<128x128xf32>
    %cst_13 = arith.constant dense<0.000000e+00> : vector<8x128xf32>
    %13 = tpu.matmul %11, %12, %cst_13 {dimension_numbers = #tpu.dot_dimension_numbers<[1], [0], [0], [1], [0, 0, 1, 1], [], []>} : vector<8x128xf32>, vector<128x128xf32>, vector<8x128xf32> -> vector<8x128xf32>
    %c0_14 = arith.constant 0 : index
    %c0_15 = arith.constant 0 : index
    %14 = vector.load %arg7[%c0_14, %c0_15] : memref<1x128xf32, #tpu.memory_space<vmem>>, vector<1x128xf32>
    %15 = vector.broadcast %14 : vector<1x128xf32> to vector<8x128xf32>
    %16 = arith.addf %13, %15 : vector<8x128xf32>
    %c0_16 = arith.constant 0 : index
    %c0_17 = arith.constant 0 : index
    %17 = vector.load %arg8[%c0_16, %c0_17] : memref<8x128xf32, #tpu.memory_space<vmem>>, vector<8x128xf32>
    tpu.vector_store %arg8[%c0_16, %c0_17], %16 {strides = array<i32>} : memref<8x128xf32, #tpu.memory_space<vmem>>, vector<8x128xf32>,
    return
  }
  func.func @transform_0(%arg0: i32) -> (i32, i32) {
    %c0_i32 = arith.constant 0 : i32
    %c0_i32_0 = arith.constant 0 : i32
    return %arg0, %c0_i32 : i32, i32
  }
  func.func @transform_1(%arg0: i32) -> (i32, i32) {
    %c0_i32 = arith.constant 0 : i32
    %c0_i32_0 = arith.constant 0 : i32
    return %arg0, %c0_i32 : i32, i32
  }
  func.func @transform_2(%arg0: i32) -> (i32, i32) {
    %c0_i32 = arith.constant 0 : i32
    %c0_i32_0 = arith.constant 0 : i32
    %c0_i32_1 = arith.constant 0 : i32
    return %c0_i32, %c0_i32_0 : i32, i32
  }
  func.func @transform_3(%arg0: i32) -> (i32, i32) {
    %c0_i32 = arith.constant 0 : i32
    %c0_i32_0 = arith.constant 0 : i32
    %c0_i32_1 = arith.constant 0 : i32
    return %c0_i32, %c0_i32_0 : i32, i32
  }
  func.func @transform_4(%arg0: i32) -> (i32, i32) {
    %c0_i32 = arith.constant 0 : i32
    %c0_i32_0 = arith.constant 0 : i32
    %c0_i32_1 = arith.constant 0 : i32
    return %c0_i32, %c0_i32_0 : i32, i32
  }
  func.func @transform_5(%arg0: i32) -> (i32, i32) {
    %c0_i32 = arith.constant 0 : i32
    %c0_i32_0 = arith.constant 0 : i32
    %c0_i32_1 = arith.constant 0 : i32
    return %c0_i32, %c0_i32_0 : i32, i32
  }
  func.func @transform_6(%arg0: i32) -> (i32, i32) {
    %c0_i32 = arith.constant 0 : i32
    %c0_i32_0 = arith.constant 0 : i32
    %c0_i32_1 = arith.constant 0 : i32
    return %c0_i32, %c0_i32_0 : i32, i32
  }
  func.func @transform_7(%arg0: i32) -> (i32, i32) {
    %c0_i32 = arith.constant 0 : i32
    %c0_i32_0 = arith.constant 0 : i32
    return %arg0, %c0_i32 : i32, i32
  }
}

</mosaic_0001>

<llo_original>
// kernel: tpu_custom_call.1
$region0: #{tpu_custom_call.1}
  #allocation0 [shape = 'u32[]', space=smem, size = 0x4, offset = 0x4, fixed_abs, tag = 'smem constant byte address 0x4 - core index']
  #allocation1 [shape = 'u32[72,128]{1,0:T(1,128)}', space=vmem, size = 0x9000, scoped, tag = 'internal scratch']
  %s0 = inlined_call_operand.hbm [shape: f32[8,128], index: 0, kind: input, shape index: {}]
  %s1 = inlined_call_operand.hbm [shape: f32[8,128], index: 1, kind: input, shape index: {}]
  %s2 = inlined_call_operand.hbm [shape: f32[128,128], index: 2, kind: input, shape index: {}]
  %s3 = inlined_call_operand.hbm [shape: f32[128,128], index: 3, kind: input, shape index: {}]
  %s4 = inlined_call_operand.vmem [shape: f32[1,128], index: 4, kind: input, shape index: {}]
  %s5 = inlined_call_operand.hbm [shape: f32[128,128], index: 5, kind: input, shape index: {}]
  %s6 = inlined_call_operand.vmem [shape: f32[1,128], index: 6, kind: input, shape index: {}]
  %s7 = inlined_call_operand.hbm [shape: f32[8,128], index: 7, kind: output, shape index: {}]
  %s8 = sld [smem:[#allocation0]]
  $region58: #{tpu_custom_call.1} parent=0
    _
  %s10 = ssub.s32 1, %s8
  %s11 = scalar_select 0, %s10, %s8
  $region1: #{tpu_custom_call.1} parent=0
    #allocation2 [shape = 'u8[4096]{0}', space=vmem, size = 0x1000, scoped, tag = 'input window, operand 0, single buffered']
    #allocation3 [shape = 's32[1]{0}', space=sflag, size = 0x4, scoped, tag = 'scoped memory for tpu_custom_call.1']
    #allocation4 [shape = 's32[1]{0}', space=sflag, size = 0x4, scoped, tag = 'scoped memory for tpu_custom_call.1']
    #allocation5 [shape = 'u8[4096]{0}', space=vmem, size = 0x1000, scoped, tag = 'input window, operand 1, single buffered']
    #allocation6 [shape = 's32[1]{0}', space=sflag, size = 0x4, scoped, tag = 'scoped memory for tpu_custom_call.1']
    #allocation7 [shape = 'u8[65536]{0}', space=vmem, size = 0x10000, scoped, tag = 'input window, operand 2, single buffered']
    #allocation8 [shape = 'u8[65536]{0}', space=vmem, size = 0x10000, scoped, tag = 'input window, operand 3, single buffered']
    #allocation9 [shape = 's32[1]{0}', space=sflag, size = 0x4, scoped, tag = 'scoped memory for tpu_custom_call.1']
    #allocation10 [shape = 'u8[65536]{0}', space=vmem, size = 0x10000, scoped, tag = 'input window, operand 5, single buffered']
    #allocation11 [shape = 'u8[4096]{0}', space=vmem, size = 0x1000, scoped, tag = 'output window, operand 0, single buffered']
    %12 = vsyncpa [#allocation3], 0
    %13 = vsyncpa [#allocation6], 0
    %14 = vsyncpa [#allocation9], 0
    %15 = vsyncpa [#allocation4], 0
    // Predicated region
    $region2: #{tpu_custom_call.1} parent=1 // pred_check
      _
    $region3: #{tpu_custom_call.1} parent=1 // pred_check_branch
      %17 = sbr.rel (0) target = $region5
    $region4: #{tpu_custom_call.1} parent=1 // pred_region
      %19 = vsyncadd [#allocation3], 0
      %s21 = sshll.u32 %s0, 4
      %s22 = int_to_ptr.hbm [resolvable:$true] %s21
      %s23 = sshll.u32 [#allocation2], 4
      %s24 = int_to_ptr.vmem [resolvable:$true] %s23
      %26 = dma.hbm_to_vmem [thread:$0]  %s22, 128, %s24, [#allocation3]
    $region5: #{tpu_custom_call.1} parent=1 // pred_fallthru
      _
    // Predicated region
    $region6: #{tpu_custom_call.1} parent=1 // pred_check
      _
    $region7: #{tpu_custom_call.1} parent=1 // pred_check_branch
      %28 = sbr.rel (0) target = $region9
    $region8: #{tpu_custom_call.1} parent=1 // pred_region
      %30 = vsyncadd [#allocation6], 0
      %s32 = sshll.u32 %s1, 4
      %s33 = int_to_ptr.hbm [resolvable:$true] %s32
      %s34 = sshll.u32 [#allocation5], 4
      %s35 = int_to_ptr.vmem [resolvable:$true] %s34
      %37 = dma.hbm_to_vmem [thread:$0]  %s33, 128, %s35, [#allocation6]
    $region9: #{tpu_custom_call.1} parent=1 // pred_fallthru
      _
    // Predicated region
    $region10: #{tpu_custom_call.1} parent=1 // pred_check
      _
    $region11: #{tpu_custom_call.1} parent=1 // pred_check_branch
      %39 = sbr.rel (0) target = $region13
    $region12: #{tpu_custom_call.1} parent=1 // pred_region
      %41 = vsyncadd [#allocation6], 0
      %s42 = sshll.u32 %s2, 4
      %s43 = int_to_ptr.hbm [resolvable:$true] %s42
      %s44 = sshll.u32 [#allocation7], 4
      %s45 = int_to_ptr.vmem [resolvable:$true] %s44
      %50 = dma.hbm_to_vmem [thread:$0]  %s43, 2048, %s45, [#allocation6], 128, 128, 8
    $region13: #{tpu_custom_call.1} parent=1 // pred_fallthru
      _
    // Predicated region
    $region14: #{tpu_custom_call.1} parent=1 // pred_check
      _
    $region15: #{tpu_custom_call.1} parent=1 // pred_check_branch
      %52 = sbr.rel (0) target = $region17
    $region16: #{tpu_custom_call.1} parent=1 // pred_region
      %54 = vsyncadd [#allocation9], 0
      %s55 = sshll.u32 %s3, 4
      %s56 = int_to_ptr.hbm [resolvable:$true] %s55
      %s57 = sshll.u32 [#allocation8], 4
      %s58 = int_to_ptr.vmem [resolvable:$true] %s57
      %63 = dma.hbm_to_vmem [thread:$0]  %s56, 2048, %s58, [#allocation9], 128, 128, 8
    $region17: #{tpu_custom_call.1} parent=1 // pred_fallthru
      _
    // Predicated region
    $region18: #{tpu_custom_call.1} parent=1 // pred_check
      _
    $region19: #{tpu_custom_call.1} parent=1 // pred_check_branch
      %65 = sbr.rel (0) target = $region21
    $region20: #{tpu_custom_call.1} parent=1 // pred_region
      _
    $region21: #{tpu_custom_call.1} parent=1 // pred_fallthru
      _
    // Predicated region
    $region22: #{tpu_custom_call.1} parent=1 // pred_check
      _
    $region23: #{tpu_custom_call.1} parent=1 // pred_check_branch
      %67 = sbr.rel (0) target = $region25
    $region24: #{tpu_custom_call.1} parent=1 // pred_region
      %69 = vsyncadd [#allocation9], 0
      %s70 = sshll.u32 %s5, 4
      %s71 = int_to_ptr.hbm [resolvable:$true] %s70
      %s72 = sshll.u32 [#allocation10], 4
      %s73 = int_to_ptr.vmem [resolvable:$true] %s72
      %78 = dma.hbm_to_vmem [thread:$0]  %s71, 2048, %s73, [#allocation9], 128, 128, 8
    $region25: #{tpu_custom_call.1} parent=1 // pred_fallthru
      _
    // Predicated region
    $region26: #{tpu_custom_call.1} parent=1 // pred_check
      _
    $region27: #{tpu_custom_call.1} parent=1 // pred_check_branch
      %80 = sbr.rel (0) target = $region29
    $region28: #{tpu_custom_call.1} parent=1 // pred_region
      _
    $region29: #{tpu_custom_call.1} parent=1 // pred_fallthru
      _
    // Predicated region
    $region30: #{tpu_custom_call.1} parent=1 // pred_check
      _
    $region31: #{tpu_custom_call.1} parent=1 // pred_check_branch
      %82 = sbr.rel (0) target = $region33
    $region32: #{tpu_custom_call.1} parent=1 // pred_region
      %84 = dma.done [#allocation3], 128
    $region33: #{tpu_custom_call.1} parent=1 // pred_fallthru
      _
    // Predicated region
    $region34: #{tpu_custom_call.1} parent=1 // pred_check
      _
    $region35: #{tpu_custom_call.1} parent=1 // pred_check_branch
      %86 = sbr.rel (0) target = $region37
    $region36: #{tpu_custom_call.1} parent=1 // pred_region
      %88 = dma.done [#allocation6], 128
    $region37: #{tpu_custom_call.1} parent=1 // pred_fallthru
      _
    // Predicated region
    $region38: #{tpu_custom_call.1} parent=1 // pred_check
      _
    $region39: #{tpu_custom_call.1} parent=1 // pred_check_branch
      %90 = sbr.rel (0) target = $region41
    $region40: #{tpu_custom_call.1} parent=1 // pred_region
      %92 = dma.done [#allocation6], 2048
    $region41: #{tpu_custom_call.1} parent=1 // pred_fallthru
      _
    // Predicated region
    $region42: #{tpu_custom_call.1} parent=1 // pred_check
      _
    $region43: #{tpu_custom_call.1} parent=1 // pred_check_branch
      %94 = sbr.rel (0) target = $region45
    $region44: #{tpu_custom_call.1} parent=1 // pred_region
      %96 = dma.done [#allocation9], 2048
    $region45: #{tpu_custom_call.1} parent=1 // pred_fallthru
      _
    // Predicated region
    $region46: #{tpu_custom_call.1} parent=1 // pred_check
      _
    $region47: #{tpu_custom_call.1} parent=1 // pred_check_branch
      %98 = sbr.rel (0) target = $region49
    $region48: #{tpu_custom_call.1} parent=1 // pred_region
      %100 = dma.done [#allocation9], 2048
    $region49: #{tpu_custom_call.1} parent=1 // pred_fallthru
      _
    %v101 = vld [vmem:[#allocation2] sm:$0xff]
    %v102 = vld [vmem:[#allocation7] sm:$0xff]
    %v103 = vld [vmem:[#allocation7 + $0x8] sm:$0xff]
    %v104 = vld [vmem:[#allocation7 + $0x10] sm:$0xff]
    %v105 = vld [vmem:[#allocation7 + $0x18] sm:$0xff]
    %v106 = vld [vmem:[#allocation7 + $0x20] sm:$0xff]
    %v107 = vld [vmem:[#allocation7 + $0x28] sm:$0xff]
    %v108 = vld [vmem:[#allocation7 + $0x30] sm:$0xff]
    %v109 = vld [vmem:[#allocation7 + $0x38] sm:$0xff]
    %v110 = vld [vmem:[#allocation7 + $0x40] sm:$0xff]
    %v111 = vld [vmem:[#allocation7 + $0x48] sm:$0xff]
    %v112 = vld [vmem:[#allocation7 + $0x50] sm:$0xff]
    %v113 = vld [vmem:[#allocation7 + $0x58] sm:$0xff]
    %v114 = vld [vmem:[#allocation7 + $0x60] sm:$0xff]
    %v115 = vld [vmem:[#allocation7 + $0x68] sm:$0xff]
    %v116 = vld [vmem:[#allocation7 + $0x70] sm:$0xff]
    %v117 = vld [vmem:[#allocation7 + $0x78] sm:$0xff]
    %v118 = vld [vmem:[#allocation5] sm:$0xff]
    %v119 = vld [vmem:[#allocation8] sm:$0xff]
    %v120 = vld [vmem:[#allocation8 + $0x8] sm:$0xff]
    %v121 = vld [vmem:[#allocation8 + $0x10] sm:$0xff]
    %v122 = vld [vmem:[#allocation8 + $0x18] sm:$0xff]
    %v123 = vld [vmem:[#allocation8 + $0x20] sm:$0xff]
    %v124 = vld [vmem:[#allocation8 + $0x28] sm:$0xff]
    %v125 = vld [vmem:[#allocation8 + $0x30] sm:$0xff]
    %v126 = vld [vmem:[#allocation8 + $0x38] sm:$0xff]
    %v127 = vld [vmem:[#allocation8 + $0x40] sm:$0xff]
    %v128 = vld [vmem:[#allocation8 + $0x48] sm:$0xff]
    %v129 = vld [vmem:[#allocation8 + $0x50] sm:$0xff]
    %v130 = vld [vmem:[#allocation8 + $0x58] sm:$0xff]
    %v131 = vld [vmem:[#allocation8 + $0x60] sm:$0xff]
    %v132 = vld [vmem:[#allocation8 + $0x68] sm:$0xff]
    %v133 = vld [vmem:[#allocation8 + $0x70] sm:$0xff]
    %v134 = vld [vmem:[#allocation8 + $0x78] sm:$0xff]
    %135 = vmatpush.msra.mxu0 %v134
    %136 = vmatpush.msra.mxu0 %v133
    %137 = vmatpush.msra.mxu0 %v132
    %138 = vmatpush.msra.mxu0 %v131
    %139 = vmatpush.msra.mxu0 %v130
    %140 = vmatpush.msra.mxu0 %v129
    %141 = vmatpush.msra.mxu0 %v128
    %142 = vmatpush.msra.mxu0 %v127
    %143 = vmatpush.msra.mxu0 %v126
    %144 = vmatpush.msra.mxu0 %v125
    %145 = vmatpush.msra.mxu0 %v124
    %146 = vmatpush.msra.mxu0 %v123
    %147 = vmatpush.msra.mxu0 %v122
    %148 = vmatpush.msra.mxu0 %v121
    %149 = vmatpush.msra.mxu0 %v120
    %150 = vmatpush.msra.mxu0 %v119
    %151 = vmatmul.f32.gmra.mxu0 %v118
    %v152 = vpop.f32.mrf.mxu0
    %v153 = vadd.f32 0.0, %v152
    %154 = vdwg.mxu0
    %155 = vmatpush.msra.mxu0 %v117
    %156 = vmatpush.msra.mxu0 %v116
    %157 = vmatpush.msra.mxu0 %v115
    %158 = vmatpush.msra.mxu0 %v114
    %159 = vmatpush.msra.mxu0 %v113
    %160 = vmatpush.msra.mxu0 %v112
    %161 = vmatpush.msra.mxu0 %v111
    %162 = vmatpush.msra.mxu0 %v110
    %163 = vmatpush.msra.mxu0 %v109
    %164 = vmatpush.msra.mxu0 %v108
    %165 = vmatpush.msra.mxu0 %v107
    %166 = vmatpush.msra.mxu0 %v106
    %167 = vmatpush.msra.mxu0 %v105
    %168 = vmatpush.msra.mxu0 %v104
    %169 = vmatpush.msra.mxu0 %v103
    %170 = vmatpush.msra.mxu0 %v102
    %171 = vmatmul.f32.gmra.mxu0 %v101
    %v172 = vpop.f32.mrf.mxu0
    %v173 = vadd.f32 %v153, %v172
    %174 = vdwg.mxu0
    %v175 = vld [vmem:[%s4] sm:$0x1]
    %v177 = vperm.slane %v175, 0
    %v179 = vadd.f32 %v173, %v177
    %v180 = vmax.f32 %v179, 0.0
    %v181 = vld [vmem:[#allocation10] sm:$0xff]
    %v182 = vld [vmem:[#allocation10 + $0x8] sm:$0xff]
    %v183 = vld [vmem:[#allocation10 + $0x10] sm:$0xff]
    %v184 = vld [vmem:[#allocation10 + $0x18] sm:$0xff]
    %v185 = vld [vmem:[#allocation10 + $0x20] sm:$0xff]
    %v186 = vld [vmem:[#allocation10 + $0x28] sm:$0xff]
    %v187 = vld [vmem:[#allocation10 + $0x30] sm:$0xff]
    %v188 = vld [vmem:[#allocation10 + $0x38] sm:$0xff]
    %v189 = vld [vmem:[#allocation10 + $0x40] sm:$0xff]
    %v190 = vld [vmem:[#allocation10 + $0x48] sm:$0xff]
    %v191 = vld [vmem:[#allocation10 + $0x50] sm:$0xff]
    %v192 = vld [vmem:[#allocation10 + $0x58] sm:$0xff]
    %v193 = vld [vmem:[#allocation10 + $0x60] sm:$0xff]
    %v194 = vld [vmem:[#allocation10 + $0x68] sm:$0xff]
    %v195 = vld [vmem:[#allocation10 + $0x70] sm:$0xff]
    %v196 = vld [vmem:[#allocation10 + $0x78] sm:$0xff]
    %v197 = vld [vmem:[%s6] sm:$0x1]
    %v199 = vperm.slane %v197, 0
    %201 = vmatpush.msra.mxu0 %v196
    %202 = vmatpush.msra.mxu0 %v195
    %203 = vmatpush.msra.mxu0 %v194
    %204 = vmatpush.msra.mxu0 %v193
    %205 = vmatpush.msra.mxu0 %v192
    %206 = vmatpush.msra.mxu0 %v191
    %207 = vmatpush.msra.mxu0 %v190
    %208 = vmatpush.msra.mxu0 %v189
    %209 = vmatpush.msra.mxu0 %v188
    %210 = vmatpush.msra.mxu0 %v187
    %211 = vmatpush.msra.mxu0 %v186
    %212 = vmatpush.msra.mxu0 %v185
    %213 = vmatpush.msra.mxu0 %v184
    %214 = vmatpush.msra.mxu0 %v183
    %215 = vmatpush.msra.mxu0 %v182
    %216 = vmatpush.msra.mxu0 %v181
    %217 = vmatmul.f32.gmra.mxu0 %v180
    %v218 = vpop.f32.mrf.mxu0
    %v219 = vadd.f32 %v199, %v218
    %220 = vdwg.mxu0
    %221 = vst [vmem:[#allocation11] sm:$0xff] %v219
    // Predicated region
    $region50: #{tpu_custom_call.1} parent=1 // pred_check
      _
    $region51: #{tpu_custom_call.1} parent=1 // pred_check_branch
      %223 = sbr.rel (0) target = $region53
    $region52: #{tpu_custom_call.1} parent=1 // pred_region
      %225 = vsyncadd [#allocation4], 0
      %s227 = sshll.u32 [#allocation11], 4
      %s228 = int_to_ptr.vmem [resolvable:$true] %s227
      %s229 = sshll.u32 %s7, 4
      %s230 = int_to_ptr.hbm [resolvable:$true] %s229
      %232 = dma.vmem_to_hbm [thread:$0]  %s228, 128, %s230, [#allocation4]
    $region53: #{tpu_custom_call.1} parent=1 // pred_fallthru
      _
    // Predicated region
    $region54: #{tpu_custom_call.1} parent=1 // pred_check
      _
    $region55: #{tpu_custom_call.1} parent=1 // pred_check_branch
      %234 = sbr.rel (0) target = $region57
    $region56: #{tpu_custom_call.1} parent=1 // pred_region
      %236 = dma.done [#allocation4], 128
    $region57: #{tpu_custom_call.1} parent=1 // pred_fallthru
      _
    %237 = vsyncpa [#allocation3], 1
    %238 = vsyncpa [#allocation6], 1
    %239 = vsyncpa [#allocation9], 1
    %240 = vsyncpa [#allocation4], 1

</llo_original>
